<compile_context>
chip_gen: v7x
topology: tpu7x:2x2x1
jax: 0.10.0
libtpu: 0.0.40
codegen_flags: <defaults>
</compile_context>

<pallas_src>
import jax
import jax.numpy as jnp
from jax.experimental import pallas as pl
from jax.experimental.pallas import tpu as pltpu


_LANE = 128
# Minimum sublane tile per element byte width (f32:8, bf16:16, int8/fp8:32).
_MIN_SUBLANE = {4: 8, 2: 16, 1: 32}
# Per-block budget: in + out, double-buffered (~4x block bytes) stays well
# under the 32 MiB scoped VMEM limit (safe on v7x's 64 MiB physical VMEM).
_MAX_BLOCK_BYTES = 6 * 1024 * 1024
_VMEM_LIMIT_BYTES = 32 * 1024 * 1024
# Cap for the lane (last) dim of the 2D view: >=512 is lane-dense, <=8192
# keeps the row dim usable for blocking on big tensors.
_MAX_LAST_DIM = 8192


def _relu_kernel(x_ref, o_ref):
    x = x_ref[...]
    o_ref[...] = jnp.maximum(x, jnp.zeros((), dtype=x.dtype))


def _choose_last_dim(n_elems: int) -> int:
    """Largest multiple of 128 that divides n_elems and is <= _MAX_LAST_DIM."""
    units = n_elems // _LANE
    max_units = max(1, min(units, _MAX_LAST_DIM // _LANE))
    for k in range(max_units, 0, -1):
        if units % k == 0:
            return k * _LANE
    return _LANE


def _relu_2d(x2d: jax.Array) -> jax.Array:
    """ReLU on a (rows, last) lane-dense view (last is a multiple of 128)."""
    rows, last = x2d.shape
    dtype = x2d.dtype
    itemsize = jnp.dtype(dtype).itemsize
    min_sub = _MIN_SUBLANE.get(itemsize, 8)
    row_bytes = last * itemsize
    total_bytes = rows * row_bytes

    if total_bytes <= _MAX_BLOCK_BYTES:
        # Small tensor (the module's case): single whole-tensor block, one
        # grid step.  Do NOT split further — per-step overhead (~0.35 us)
        # exceeds any read/write DMA overlap gain below a few MiB.
        block_rows = rows
        num_blocks = 1
    else:
        # Large tensor: ~6 MiB row blocks, aligned to the dtype's min sublane
        # tile; the (possibly partial) last block is masked by Pallas.
        block_rows = max(min_sub,
                         (_MAX_BLOCK_BYTES // row_bytes) // min_sub * min_sub)
        block_rows = min(block_rows, rows)
        num_blocks = pl.cdiv(rows, block_rows)
        # v7x has 2 TensorCores: prefer an even block count so the "parallel"
        # grid axis splits evenly across both cores.
        if num_blocks > 1 and num_blocks % 2 == 1:
            target = num_blocks + 1
            per_block = pl.cdiv(rows, target)
            block_rows = pl.cdiv(per_block, min_sub) * min_sub
            block_rows = max(min_sub, min(block_rows, rows))
            num_blocks = pl.cdiv(rows, block_rows)

    return pl.pallas_call(
        _relu_kernel,
        out_shape=jax.ShapeDtypeStruct((rows, last), dtype),
        grid_spec=pltpu.PrefetchScalarGridSpec(
            num_scalar_prefetch=0,
            grid=(num_blocks,),
            in_specs=[pl.BlockSpec((block_rows, last), lambda i: (i, 0))],
            out_specs=pl.BlockSpec((block_rows, last), lambda i: (i, 0)),
        ),
        compiler_params=pltpu.CompilerParams(
            dimension_semantics=("parallel",),
            vmem_limit_bytes=_VMEM_LIMIT_BYTES,
        ),
    )(x2d)


def relu_pallas(x: jax.Array) -> jax.Array:
    """Elementwise ReLU via Pallas. Any shape; returns same shape/dtype."""
    orig_shape = x.shape
    n = x.size
    if n == 0:
        return x

    rem = n % _LANE
    if rem == 0:
        # Main path (always hit for this module: 175616 = 1372 * 128).
        last = _choose_last_dim(n)
        rows = n // last
        return _relu_2d(x.reshape(rows, last)).reshape(orig_shape)

    # Ragged size (never hit for this module): kernel on the 128-aligned bulk,
    # <128-element tail in plain jnp.  No full-array jnp.pad / slice passes.
    flat = x.reshape(-1)
    bulk_n = n - rem
    tail = jnp.maximum(flat[bulk_n:], jnp.zeros((), dtype=x.dtype))
    if bulk_n == 0:
        return tail.reshape(orig_shape)
    last = _choose_last_dim(bulk_n)
    bulk = _relu_2d(flat[:bulk_n].reshape(bulk_n // last, last)).reshape(-1)
    return jnp.concatenate([bulk, tail]).reshape(orig_shape)


class M:
    """JAX/Pallas equivalent of the PyTorch module (a single ReLU)."""

    def __call__(self, x206):
        return relu_pallas(x206)


if __name__ == "__main__":
    key = jax.random.PRNGKey(0)
    # NCHW input matching the reference module's forward: [1, 896, 14, 14] f32.
    x206 = jax.random.normal(key, (1, 896, 14, 14), dtype=jnp.float32)

    model = M()
    x207 = jax.block_until_ready(model(x206))

    ref = jnp.maximum(x206, 0.0)
    assert x207.shape == x206.shape and x207.dtype == x206.dtype
    assert bool(jnp.allclose(x207, ref))

    print("KERNEL_OK")
</pallas_src>

<mosaic_0001>
module attributes {stable_mosaic.version = 11 : i64} {
  func.func @_relu_kernel(%arg0: i32, %arg1: memref<28x6272xf32, #tpu.memory_space<vmem>>, %arg2: memref<28x6272xf32, #tpu.memory_space<vmem>>) attributes {dimension_semantics = [#tpu.dimension_semantics<parallel>], iteration_bounds = array<i64: 1>, scalar_prefetch = 0 : i64, scratch_operands = 0 : i64, tpu.core_type = #tpu.core_type<tc>, window_params = [{transform_indices = @transform_0, window_bounds = array<i64: 28, 6272>}, {transform_indices = @transform_1, window_bounds = array<i64: 28, 6272>}]} {
    %c0 = arith.constant 0 : index
    %c0_0 = arith.constant 0 : index
    %0 = vector.load %arg1[%c0, %c0_0] : memref<28x6272xf32, #tpu.memory_space<vmem>>, vector<28x6272xf32>
    %cst = arith.constant 0.000000e+00 : f32
    %1 = vector.broadcast %cst : f32 to vector<28x6272xf32>
    %2 = arith.maximumf %0, %1 : vector<28x6272xf32>
    %c0_1 = arith.constant 0 : index
    %c0_2 = arith.constant 0 : index
    %3 = vector.load %arg2[%c0_1, %c0_2] : memref<28x6272xf32, #tpu.memory_space<vmem>>, vector<28x6272xf32>
    tpu.vector_store %arg2[%c0_1, %c0_2], %2 {strides = array<i32>} : memref<28x6272xf32, #tpu.memory_space<vmem>>, vector<28x6272xf32>,
    return
  }
  func.func @transform_0(%arg0: i32) -> (i32, i32) {
    %c0_i32 = arith.constant 0 : i32
    %c0_i32_0 = arith.constant 0 : i32
    return %arg0, %c0_i32 : i32, i32
  }
  func.func @transform_1(%arg0: i32) -> (i32, i32) {
    %c0_i32 = arith.constant 0 : i32
    %c0_i32_0 = arith.constant 0 : i32
    return %arg0, %c0_i32 : i32, i32
  }
}

</mosaic_0001>

<llo_original>
// kernel: tpu_custom_call.1
$region0: #{tpu_custom_call.1}
  #allocation0 [shape = 'u32[]', space=smem, size = 0x4, offset = 0x4, fixed_abs, tag = 'smem constant byte address 0x4 - core index']
  #allocation1 [shape = 'u32[144,128]{1,0:T(1,128)}', space=vmem, size = 0x12000, scoped, tag = 'internal scratch']
  %s0 = inlined_call_operand.hbm [shape: f32[28,6272], index: 0, kind: input, shape index: {}]
  %s1 = inlined_call_operand.hbm [shape: f32[28,6272], index: 1, kind: output, shape index: {}]
  %s2 = sld [smem:[#allocation0]]
  $region18: #{tpu_custom_call.1} parent=0
    _
  %s4 = ssub.s32 1, %s2
  %s5 = scalar_select 0, %s4, %s2
  $region1: #{tpu_custom_call.1} parent=0
    #allocation2 [shape = 'u8[802816]{0}', space=vmem, size = 0xc4000, scoped, tag = 'input window, operand 0, single buffered']
    #allocation3 [shape = 's32[1]{0}', space=sflag, size = 0x4, scoped, tag = 'scoped memory for tpu_custom_call.1']
    #allocation4 [shape = 's32[1]{0}', space=sflag, size = 0x4, scoped, tag = 'scoped memory for tpu_custom_call.1']
    #allocation5 [shape = 'u8[802816]{0}', space=vmem, size = 0xc4000, scoped, tag = 'output window, operand 0, single buffered']
    %6 = vsyncpa [#allocation3], 0
    %7 = vsyncpa [#allocation4], 0
    // Predicated region
    $region2: #{tpu_custom_call.1} parent=1 // pred_check
      _
    $region3: #{tpu_custom_call.1} parent=1 // pred_check_branch
      %9 = sbr.rel (0) target = $region5
    $region4: #{tpu_custom_call.1} parent=1 // pred_region
      %s11 = ssub.s32 25088, 25088
      %12 = vsyncadd [#allocation3], %s11
      %s13 = sshll.u32 [#allocation2], 4
      %s14 = int_to_ptr.vmem [resolvable:$true] %s13
      %19 = dma.hbm_to_vmem [thread:$0]  %s0, 25088, %s14, [#allocation3], 6272, 6272, 392
    $region5: #{tpu_custom_call.1} parent=1 // pred_fallthru
      _
    // Predicated region
    $region6: #{tpu_custom_call.1} parent=1 // pred_check
      _
    $region7: #{tpu_custom_call.1} parent=1 // pred_check_branch
      %21 = sbr.rel (0) target = $region9
    $region8: #{tpu_custom_call.1} parent=1 // pred_region
      %22 = dma.done [#allocation3], 25088
    $region9: #{tpu_custom_call.1} parent=1 // pred_fallthru
      _
    %v23 = vld [vmem:[#allocation2] sm:$0xff]
    %v24 = vld [vmem:[#allocation2 + $0x8] sm:$0xff]
    %v25 = vld [vmem:[#allocation2 + $0x10] sm:$0xff]
    %v26 = vld [vmem:[#allocation2 + $0x18] sm:$0xff]
    %v27 = vld [vmem:[#allocation2 + $0x20] sm:$0xff]
    %v28 = vld [vmem:[#allocation2 + $0x28] sm:$0xff]
    %v29 = vld [vmem:[#allocation2 + $0x30] sm:$0xff]
    %v30 = vld [vmem:[#allocation2 + $0x38] sm:$0xff]
    %v31 = vld [vmem:[#allocation2 + $0x40] sm:$0xff]
    %v32 = vld [vmem:[#allocation2 + $0x48] sm:$0xff]
    %v33 = vld [vmem:[#allocation2 + $0x50] sm:$0xff]
    %v34 = vld [vmem:[#allocation2 + $0x58] sm:$0xff]
    %v35 = vld [vmem:[#allocation2 + $0x60] sm:$0xff]
    %v36 = vld [vmem:[#allocation2 + $0x68] sm:$0xff]
    %v37 = vld [vmem:[#allocation2 + $0x70] sm:$0xff]
    %v38 = vld [vmem:[#allocation2 + $0x78] sm:$0xff]
    %v39 = vld [vmem:[#allocation2 + $0x80] sm:$0xff]
    %v40 = vld [vmem:[#allocation2 + $0x88] sm:$0xff]
    %v41 = vld [vmem:[#allocation2 + $0x90] sm:$0xff]
    %v42 = vld [vmem:[#allocation2 + $0x98] sm:$0xff]
    %v43 = vld [vmem:[#allocation2 + $0xa0] sm:$0xff]
    %v44 = vld [vmem:[#allocation2 + $0xa8] sm:$0xff]
    %v45 = vld [vmem:[#allocation2 + $0xb0] sm:$0xff]
    %v46 = vld [vmem:[#allocation2 + $0xb8] sm:$0xff]
    %v47 = vld [vmem:[#allocation2 + $0xc0] sm:$0xff]
    %v48 = vld [vmem:[#allocation2 + $0xc8] sm:$0xff]
    %v49 = vld [vmem:[#allocation2 + $0xd0] sm:$0xff]
    %v50 = vld [vmem:[#allocation2 + $0xd8] sm:$0xff]
    %v51 = vld [vmem:[#allocation2 + $0xe0] sm:$0xff]
    %v52 = vld [vmem:[#allocation2 + $0xe8] sm:$0xff]
    %v53 = vld [vmem:[#allocation2 + $0xf0] sm:$0xff]
    %v54 = vld [vmem:[#allocation2 + $0xf8] sm:$0xff]
    %v55 = vld [vmem:[#allocation2 + $0x100] sm:$0xff]
    %v56 = vld [vmem:[#allocation2 + $0x108] sm:$0xff]
    %v57 = vld [vmem:[#allocation2 + $0x110] sm:$0xff]
    %v58 = vld [vmem:[#allocation2 + $0x118] sm:$0xff]
    %v59 = vld [vmem:[#allocation2 + $0x120] sm:$0xff]
    %v60 = vld [vmem:[#allocation2 + $0x128] sm:$0xff]
    %v61 = vld [vmem:[#allocation2 + $0x130] sm:$0xff]
    %v62 = vld [vmem:[#allocation2 + $0x138] sm:$0xff]
    %v63 = vld [vmem:[#allocation2 + $0x140] sm:$0xff]
    %v64 = vld [vmem:[#allocation2 + $0x148] sm:$0xff]
    %v65 = vld [vmem:[#allocation2 + $0x150] sm:$0xff]
    %v66 = vld [vmem:[#allocation2 + $0x158] sm:$0xff]
    %v67 = vld [vmem:[#allocation2 + $0x160] sm:$0xff]
    %v68 = vld [vmem:[#allocation2 + $0x168] sm:$0xff]
    %v69 = vld [vmem:[#allocation2 + $0x170] sm:$0xff]
    %v70 = vld [vmem:[#allocation2 + $0x178] sm:$0xff]
    %v71 = vld [vmem:[#allocation2 + $0x180] sm:$0xff]
    %v72 = vld [vmem:[#allocation2 + $0x188] sm:$0xff]
    %v73 = vld [vmem:[#allocation2 + $0x190] sm:$0xff]
    %v74 = vld [vmem:[#allocation2 + $0x198] sm:$0xff]
    %v75 = vld [vmem:[#allocation2 + $0x1a0] sm:$0xff]
    %v76 = vld [vmem:[#allocation2 + $0x1a8] sm:$0xff]
    %v77 = vld [vmem:[#allocation2 + $0x1b0] sm:$0xff]
    %v78 = vld [vmem:[#allocation2 + $0x1b8] sm:$0xff]
    %v79 = vld [vmem:[#allocation2 + $0x1c0] sm:$0xff]
    %v80 = vld [vmem:[#allocation2 + $0x1c8] sm:$0xff]
    %v81 = vld [vmem:[#allocation2 + $0x1d0] sm:$0xff]
    %v82 = vld [vmem:[#allocation2 + $0x1d8] sm:$0xff]
    %v83 = vld [vmem:[#allocation2 + $0x1e0] sm:$0xff]
    %v84 = vld [vmem:[#allocation2 + $0x1e8] sm:$0xff]
    %v85 = vld [vmem:[#allocation2 + $0x1f0] sm:$0xff]
    %v86 = vld [vmem:[#allocation2 + $0x1f8] sm:$0xff]
    %v87 = vld [vmem:[#allocation2 + $0x200] sm:$0xff]
    %v88 = vld [vmem:[#allocation2 + $0x208] sm:$0xff]
    %v89 = vld [vmem:[#allocation2 + $0x210] sm:$0xff]
    %v90 = vld [vmem:[#allocation2 + $0x218] sm:$0xff]
    %v91 = vld [vmem:[#allocation2 + $0x220] sm:$0xff]
    %v92 = vld [vmem:[#allocation2 + $0x228] sm:$0xff]
    %v93 = vld [vmem:[#allocation2 + $0x230] sm:$0xff]
    %v94 = vld [vmem:[#allocation2 + $0x238] sm:$0xff]
    %v95 = vld [vmem:[#allocation2 + $0x240] sm:$0xff]
    %v96 = vld [vmem:[#allocation2 + $0x248] sm:$0xff]
    %v97 = vld [vmem:[#allocation2 + $0x250] sm:$0xff]
    %v98 = vld [vmem:[#allocation2 + $0x258] sm:$0xff]
    %v99 = vld [vmem:[#allocation2 + $0x260] sm:$0xff]
    %v100 = vld [vmem:[#allocation2 + $0x268] sm:$0xff]
    %v101 = vld [vmem:[#allocation2 + $0x270] sm:$0xff]
    %v102 = vld [vmem:[#allocation2 + $0x278] sm:$0xff]
    %v103 = vld [vmem:[#allocation2 + $0x280] sm:$0xff]
    %v104 = vld [vmem:[#allocation2 + $0x288] sm:$0xff]
    %v105 = vld [vmem:[#allocation2 + $0x290] sm:$0xff]
    %v106 = vld [vmem:[#allocation2 + $0x298] sm:$0xff]
    %v107 = vld [vmem:[#allocation2 + $0x2a0] sm:$0xff]
    %v108 = vld [vmem:[#allocation2 + $0x2a8] sm:$0xff]
    %v109 = vld [vmem:[#allocation2 + $0x2b0] sm:$0xff]
    %v110 = vld [vmem:[#allocation2 + $0x2b8] sm:$0xff]
    %v111 = vld [vmem:[#allocation2 + $0x2c0] sm:$0xff]
    %v112 = vld [vmem:[#allocation2 + $0x2c8] sm:$0xff]
    %v113 = vld [vmem:[#allocation2 + $0x2d0] sm:$0xff]
    %v114 = vld [vmem:[#allocation2 + $0x2d8] sm:$0xff]
    %v115 = vld [vmem:[#allocation2 + $0x2e0] sm:$0xff]
    %v116 = vld [vmem:[#allocation2 + $0x2e8] sm:$0xff]
    %v117 = vld [vmem:[#allocation2 + $0x2f0] sm:$0xff]
    %v118 = vld [vmem:[#allocation2 + $0x2f8] sm:$0xff]
    %v119 = vld [vmem:[#allocation2 + $0x300] sm:$0xff]
    %v120 = vld [vmem:[#allocation2 + $0x308] sm:$0xff]
    %v121 = vld [vmem:[#allocation2 + $0x310] sm:$0xff]
    %v122 = vld [vmem:[#allocation2 + $0x318] sm:$0xff]
    %v123 = vld [vmem:[#allocation2 + $0x320] sm:$0xff]
    %v124 = vld [vmem:[#allocation2 + $0x328] sm:$0xff]
    %v125 = vld [vmem:[#allocation2 + $0x330] sm:$0xff]
    %v126 = vld [vmem:[#allocation2 + $0x338] sm:$0xff]
    %v127 = vld [vmem:[#allocation2 + $0x340] sm:$0xff]
    %v128 = vld [vmem:[#allocation2 + $0x348] sm:$0xff]
    %v129 = vld [vmem:[#allocation2 + $0x350] sm:$0xff]
    %v130 = vld [vmem:[#allocation2 + $0x358] sm:$0xff]
    %v131 = vld [vmem:[#allocation2 + $0x360] sm:$0xff]
    %v132 = vld [vmem:[#allocation2 + $0x368] sm:$0xff]
    %v133 = vld [vmem:[#allocation2 + $0x370] sm:$0xff]
    %v134 = vld [vmem:[#allocation2 + $0x378] sm:$0xff]
    %v135 = vld [vmem:[#allocation2 + $0x380] sm:$0xff]
    %v136 = vld [vmem:[#allocation2 + $0x388] sm:$0xff]
    %v137 = vld [vmem:[#allocation2 + $0x390] sm:$0xff]
    %v138 = vld [vmem:[#allocation2 + $0x398] sm:$0xff]
    %v139 = vld [vmem:[#allocation2 + $0x3a0] sm:$0xff]
    %v140 = vld [vmem:[#allocation2 + $0x3a8] sm:$0xff]
    %v141 = vld [vmem:[#allocation2 + $0x3b0] sm:$0xff]
    %v142 = vld [vmem:[#allocation2 + $0x3b8] sm:$0xff]
    %v143 = vld [vmem:[#allocation2 + $0x3c0] sm:$0xff]
    %v144 = vld [vmem:[#allocation2 + $0x3c8] sm:$0xff]
    %v145 = vld [vmem:[#allocation2 + $0x3d0] sm:$0xff]
    %v146 = vld [vmem:[#allocation2 + $0x3d8] sm:$0xff]
    %v147 = vld [vmem:[#allocation2 + $0x3e0] sm:$0xff]
    %v148 = vld [vmem:[#allocation2 + $0x3e8] sm:$0xff]
    %v149 = vld [vmem:[#allocation2 + $0x3f0] sm:$0xff]
    %v150 = vld [vmem:[#allocation2 + $0x3f8] sm:$0xff]
    %v151 = vld [vmem:[#allocation2 + $0x400] sm:$0xff]
    %v152 = vld [vmem:[#allocation2 + $0x408] sm:$0xff]
    %v153 = vld [vmem:[#allocation2 + $0x410] sm:$0xff]
    %v154 = vld [vmem:[#allocation2 + $0x418] sm:$0xff]
    %v155 = vld [vmem:[#allocation2 + $0x420] sm:$0xff]
    %v156 = vld [vmem:[#allocation2 + $0x428] sm:$0xff]
    %v157 = vld [vmem:[#allocation2 + $0x430] sm:$0xff]
    %v158 = vld [vmem:[#allocation2 + $0x438] sm:$0xff]
    %v159 = vld [vmem:[#allocation2 + $0x440] sm:$0xff]
    %v160 = vld [vmem:[#allocation2 + $0x448] sm:$0xff]
    %v161 = vld [vmem:[#allocation2 + $0x450] sm:$0xff]
    %v162 = vld [vmem:[#allocation2 + $0x458] sm:$0xff]
    %v163 = vld [vmem:[#allocation2 + $0x460] sm:$0xff]
    %v164 = vld [vmem:[#allocation2 + $0x468] sm:$0xff]
    %v165 = vld [vmem:[#allocation2 + $0x470] sm:$0xff]
    %v166 = vld [vmem:[#allocation2 + $0x478] sm:$0xff]
    %v167 = vld [vmem:[#allocation2 + $0x480] sm:$0xff]
    %v168 = vld [vmem:[#allocation2 + $0x488] sm:$0xff]
    %v169 = vld [vmem:[#allocation2 + $0x490] sm:$0xff]
    %v170 = vld [vmem:[#allocation2 + $0x498] sm:$0xf]
    %v171 = vld [vmem:[#allocation2 + $0x4a0] sm:$0xf]
    %v172 = vld [vmem:[#allocation2 + $0x4a8] sm:$0xf]
    %v173 = vld [vmem:[#allocation2 + $0x4b0] sm:$0xf]
    %v174 = vld [vmem:[#allocation2 + $0x4b8] sm:$0xf]
    %v175 = vld [vmem:[#allocation2 + $0x4c0] sm:$0xf]
    %v176 = vld [vmem:[#allocation2 + $0x4c8] sm:$0xf]
    %v177 = vld [vmem:[#allocation2 + $0x4d0] sm:$0xf]
    %v178 = vld [vmem:[#allocation2 + $0x4d8] sm:$0xf]
    %v179 = vld [vmem:[#allocation2 + $0x4e0] sm:$0xf]
    %v180 = vld [vmem:[#allocation2 + $0x4e8] sm:$0xf]
    %v181 = vld [vmem:[#allocation2 + $0x4f0] sm:$0xf]
    %v182 = vld [vmem:[#allocation2 + $0x4f8] sm:$0xf]
    %v183 = vld [vmem:[#allocation2 + $0x500] sm:$0xf]
    %v184 = vld [vmem:[#allocation2 + $0x508] sm:$0xf]
    %v185 = vld [vmem:[#allocation2 + $0x510] sm:$0xf]
    %v186 = vld [vmem:[#allocation2 + $0x518] sm:$0xf]
    %v187 = vld [vmem:[#allocation2 + $0x520] sm:$0xf]
    %v188 = vld [vmem:[#allocation2 + $0x528] sm:$0xf]
    %v189 = vld [vmem:[#allocation2 + $0x530] sm:$0xf]
    %v190 = vld [vmem:[#allocation2 + $0x538] sm:$0xf]
    %v191 = vld [vmem:[#allocation2 + $0x540] sm:$0xf]
    %v192 = vld [vmem:[#allocation2 + $0x548] sm:$0xf]
    %v193 = vld [vmem:[#allocation2 + $0x550] sm:$0xf]
    %v194 = vld [vmem:[#allocation2 + $0x558] sm:$0xf]
    %v195 = vld [vmem:[#allocation2 + $0x560] sm:$0xf]
    %v196 = vld [vmem:[#allocation2 + $0x568] sm:$0xf]
    %v197 = vld [vmem:[#allocation2 + $0x570] sm:$0xf]
    %v198 = vld [vmem:[#allocation2 + $0x578] sm:$0xf]
    %v199 = vld [vmem:[#allocation2 + $0x580] sm:$0xf]
    %v200 = vld [vmem:[#allocation2 + $0x588] sm:$0xf]
    %v201 = vld [vmem:[#allocation2 + $0x590] sm:$0xf]
    %v202 = vld [vmem:[#allocation2 + $0x598] sm:$0xf]
    %v203 = vld [vmem:[#allocation2 + $0x5a0] sm:$0xf]
    %v204 = vld [vmem:[#allocation2 + $0x5a8] sm:$0xf]
    %v205 = vld [vmem:[#allocation2 + $0x5b0] sm:$0xf]
    %v206 = vld [vmem:[#allocation2 + $0x5b8] sm:$0xf]
    %v207 = vld [vmem:[#allocation2 + $0x5c0] sm:$0xf]
    %v208 = vld [vmem:[#allocation2 + $0x5c8] sm:$0xf]
    %v209 = vld [vmem:[#allocation2 + $0x5d0] sm:$0xf]
    %v210 = vld [vmem:[#allocation2 + $0x5d8] sm:$0xf]
    %v211 = vld [vmem:[#allocation2 + $0x5e0] sm:$0xf]
    %v212 = vld [vmem:[#allocation2 + $0x5e8] sm:$0xf]
    %v213 = vld [vmem:[#allocation2 + $0x5f0] sm:$0xf]
    %v214 = vld [vmem:[#allocation2 + $0x5f8] sm:$0xf]
    %v215 = vld [vmem:[#allocation2 + $0x600] sm:$0xf]
    %v216 = vld [vmem:[#allocation2 + $0x608] sm:$0xf]
    %v217 = vld [vmem:[#allocation2 + $0x610] sm:$0xf]
    %v218 = vld [vmem:[#allocation2 + $0x618] sm:$0xf]
    %v219 = vmax.f32 %v23, 0.0
    %v220 = vmax.f32 %v24, 0.0
    %v221 = vmax.f32 %v25, 0.0
    %v222 = vmax.f32 %v26, 0.0
    %v223 = vmax.f32 %v27, 0.0
    %v224 = vmax.f32 %v28, 0.0
    %v225 = vmax.f32 %v29, 0.0
    %v226 = vmax.f32 %v30, 0.0
    %v227 = vmax.f32 %v31, 0.0
    %v228 = vmax.f32 %v32, 0.0
    %v229 = vmax.f32 %v33, 0.0
    %v230 = vmax.f32 %v34, 0.0
    %v231 = vmax.f32 %v35, 0.0
    %v232 = vmax.f32 %v36, 0.0
    %v233 = vmax.f32 %v37, 0.0
    %v234 = vmax.f32 %v38, 0.0
    %v235 = vmax.f32 %v39, 0.0
    %v236 = vmax.f32 %v40, 0.0
    %v237 = vmax.f32 %v41, 0.0
    %v238 = vmax.f32 %v42, 0.0
    %v239 = vmax.f32 %v43, 0.0
    %v240 = vmax.f32 %v44, 0.0
    %v241 = vmax.f32 %v45, 0.0
    %v242 = vmax.f32 %v46, 0.0
    %v243 = vmax.f32 %v47, 0.0
    %v244 = vmax.f32 %v48, 0.0
    %v245 = vmax.f32 %v49, 0.0
    %v246 = vmax.f32 %v50, 0.0
    %v247 = vmax.f32 %v51, 0.0
    %v248 = vmax.f32 %v52, 0.0
    %v249 = vmax.f32 %v53, 0.0
    %v250 = vmax.f32 %v54, 0.0
    %v251 = vmax.f32 %v55, 0.0
    %v252 = vmax.f32 %v56, 0.0
    %v253 = vmax.f32 %v57, 0.0
    %v254 = vmax.f32 %v58, 0.0
    %v255 = vmax.f32 %v59, 0.0
    %v256 = vmax.f32 %v60, 0.0
    %v257 = vmax.f32 %v61, 0.0
    %v258 = vmax.f32 %v62, 0.0
    %v259 = vmax.f32 %v63, 0.0
    %v260 = vmax.f32 %v64, 0.0
    %v261 = vmax.f32 %v65, 0.0
    %v262 = vmax.f32 %v66, 0.0
    %v263 = vmax.f32 %v67, 0.0
    %v264 = vmax.f32 %v68, 0.0
    %v265 = vmax.f32 %v69, 0.0
    %v266 = vmax.f32 %v70, 0.0
    %v267 = vmax.f32 %v71, 0.0
    %v268 = vmax.f32 %v72, 0.0
    %v269 = vmax.f32 %v73, 0.0
    %v270 = vmax.f32 %v74, 0.0
    %v271 = vmax.f32 %v75, 0.0
    %v272 = vmax.f32 %v76, 0.0
    %v273 = vmax.f32 %v77, 0.0
    %v274 = vmax.f32 %v78, 0.0
    %v275 = vmax.f32 %v79, 0.0
    %v276 = vmax.f32 %v80, 0.0
    %v277 = vmax.f32 %v81, 0.0
    %v278 = vmax.f32 %v82, 0.0
    %v279 = vmax.f32 %v83, 0.0
    %v280 = vmax.f32 %v84, 0.0
    %v281 = vmax.f32 %v85, 0.0
    %v282 = vmax.f32 %v86, 0.0
    %v283 = vmax.f32 %v87, 0.0
    %v284 = vmax.f32 %v88, 0.0
    %v285 = vmax.f32 %v89, 0.0
    %v286 = vmax.f32 %v90, 0.0
    %v287 = vmax.f32 %v91, 0.0
    %v288 = vmax.f32 %v92, 0.0
    %v289 = vmax.f32 %v93, 0.0
    %v290 = vmax.f32 %v94, 0.0
    %v291 = vmax.f32 %v95, 0.0
    %v292 = vmax.f32 %v96, 0.0
    %v293 = vmax.f32 %v97, 0.0
    %v294 = vmax.f32 %v98, 0.0
    %v295 = vmax.f32 %v99, 0.0
    %v296 = vmax.f32 %v100, 0.0
    %v297 = vmax.f32 %v101, 0.0
    %v298 = vmax.f32 %v102, 0.0
    %v299 = vmax.f32 %v103, 0.0
    %v300 = vmax.f32 %v104, 0.0
    %v301 = vmax.f32 %v105, 0.0
    %v302 = vmax.f32 %v106, 0.0
    %v303 = vmax.f32 %v107, 0.0
    %v304 = vmax.f32 %v108, 0.0
    %v305 = vmax.f32 %v109, 0.0
    %v306 = vmax.f32 %v110, 0.0
    %v307 = vmax.f32 %v111, 0.0
    %v308 = vmax.f32 %v112, 0.0
    %v309 = vmax.f32 %v113, 0.0
    %v310 = vmax.f32 %v114, 0.0
    %v311 = vmax.f32 %v115, 0.0
    %v312 = vmax.f32 %v116, 0.0
    %v313 = vmax.f32 %v117, 0.0
    %v314 = vmax.f32 %v118, 0.0
    %v315 = vmax.f32 %v119, 0.0
    %v316 = vmax.f32 %v120, 0.0
    %v317 = vmax.f32 %v121, 0.0
    %v318 = vmax.f32 %v122, 0.0
    %v319 = vmax.f32 %v123, 0.0
    %v320 = vmax.f32 %v124, 0.0
    %v321 = vmax.f32 %v125, 0.0
    %v322 = vmax.f32 %v126, 0.0
    %v323 = vmax.f32 %v127, 0.0
    %v324 = vmax.f32 %v128, 0.0
    %v325 = vmax.f32 %v129, 0.0
    %v326 = vmax.f32 %v130, 0.0
    %v327 = vmax.f32 %v131, 0.0
    %v328 = vmax.f32 %v132, 0.0
    %v329 = vmax.f32 %v133, 0.0
    %v330 = vmax.f32 %v134, 0.0
    %v331 = vmax.f32 %v135, 0.0
    %v332 = vmax.f32 %v136, 0.0
    %v333 = vmax.f32 %v137, 0.0
    %v334 = vmax.f32 %v138, 0.0
    %v335 = vmax.f32 %v139, 0.0
    %v336 = vmax.f32 %v140, 0.0
    %v337 = vmax.f32 %v141, 0.0
    %v338 = vmax.f32 %v142, 0.0
    %v339 = vmax.f32 %v143, 0.0
    %v340 = vmax.f32 %v144, 0.0
    %v341 = vmax.f32 %v145, 0.0
    %v342 = vmax.f32 %v146, 0.0
    %v343 = vmax.f32 %v147, 0.0
    %v344 = vmax.f32 %v148, 0.0
    %v345 = vmax.f32 %v149, 0.0
    %v346 = vmax.f32 %v150, 0.0
    %v347 = vmax.f32 %v151, 0.0
    %v348 = vmax.f32 %v152, 0.0
    %v349 = vmax.f32 %v153, 0.0
    %v350 = vmax.f32 %v154, 0.0
    %v351 = vmax.f32 %v155, 0.0
    %v352 = vmax.f32 %v156, 0.0
    %v353 = vmax.f32 %v157, 0.0
    %v354 = vmax.f32 %v158, 0.0
    %v355 = vmax.f32 %v159, 0.0
    %v356 = vmax.f32 %v160, 0.0
    %v357 = vmax.f32 %v161, 0.0
    %v358 = vmax.f32 %v162, 0.0
    %v359 = vmax.f32 %v163, 0.0
    %v360 = vmax.f32 %v164, 0.0
    %v361 = vmax.f32 %v165, 0.0
    %v362 = vmax.f32 %v166, 0.0
    %v363 = vmax.f32 %v167, 0.0
    %v364 = vmax.f32 %v168, 0.0
    %v365 = vmax.f32 %v169, 0.0
    %v366 = vmax.f32 %v170, 0.0
    %v367 = vmax.f32 %v171, 0.0
    %v368 = vmax.f32 %v172, 0.0
    %v369 = vmax.f32 %v173, 0.0
    %v370 = vmax.f32 %v174, 0.0
    %v371 = vmax.f32 %v175, 0.0
    %v372 = vmax.f32 %v176, 0.0
    %v373 = vmax.f32 %v177, 0.0
    %v374 = vmax.f32 %v178, 0.0
    %v375 = vmax.f32 %v179, 0.0
    %v376 = vmax.f32 %v180, 0.0
    %v377 = vmax.f32 %v181, 0.0
    %v378 = vmax.f32 %v182, 0.0
    %v379 = vmax.f32 %v183, 0.0
    %v380 = vmax.f32 %v184, 0.0
    %v381 = vmax.f32 %v185, 0.0
    %v382 = vmax.f32 %v186, 0.0
    %v383 = vmax.f32 %v187, 0.0
    %v384 = vmax.f32 %v188, 0.0
    %v385 = vmax.f32 %v189, 0.0
    %v386 = vmax.f32 %v190, 0.0
    %v387 = vmax.f32 %v191, 0.0
    %v388 = vmax.f32 %v192, 0.0
    %v389 = vmax.f32 %v193, 0.0
    %v390 = vmax.f32 %v194, 0.0
    %v391 = vmax.f32 %v195, 0.0
    %v392 = vmax.f32 %v196, 0.0
    %v393 = vmax.f32 %v197, 0.0
    %v394 = vmax.f32 %v198, 0.0
    %v395 = vmax.f32 %v199, 0.0
    %v396 = vmax.f32 %v200, 0.0
    %v397 = vmax.f32 %v201, 0.0
    %v398 = vmax.f32 %v202, 0.0
    %v399 = vmax.f32 %v203, 0.0
    %v400 = vmax.f32 %v204, 0.0
    %v401 = vmax.f32 %v205, 0.0
    %v402 = vmax.f32 %v206, 0.0
    %v403 = vmax.f32 %v207, 0.0
    %v404 = vmax.f32 %v208, 0.0
    %v405 = vmax.f32 %v209, 0.0
    %v406 = vmax.f32 %v210, 0.0
    %v407 = vmax.f32 %v211, 0.0
    %v408 = vmax.f32 %v212, 0.0
    %v409 = vmax.f32 %v213, 0.0
    %v410 = vmax.f32 %v214, 0.0
    %v411 = vmax.f32 %v215, 0.0
    %v412 = vmax.f32 %v216, 0.0
    %v413 = vmax.f32 %v217, 0.0
    %v414 = vmax.f32 %v218, 0.0
    %415 = vst [vmem:[#allocation5] sm:$0xff] %v219
    %416 = vst [vmem:[#allocation5 + $0x8] sm:$0xff] %v220
    %417 = vst [vmem:[#allocation5 + $0x10] sm:$0xff] %v221
    %418 = vst [vmem:[#allocation5 + $0x18] sm:$0xff] %v222
    %419 = vst [vmem:[#allocation5 + $0x20] sm:$0xff] %v223
    %420 = vst [vmem:[#allocation5 + $0x28] sm:$0xff] %v224
    %421 = vst [vmem:[#allocation5 + $0x30] sm:$0xff] %v225
    %422 = vst [vmem:[#allocation5 + $0x38] sm:$0xff] %v226
    %423 = vst [vmem:[#allocation5 + $0x40] sm:$0xff] %v227
    %424 = vst [vmem:[#allocation5 + $0x48] sm:$0xff] %v228
    %425 = vst [vmem:[#allocation5 + $0x50] sm:$0xff] %v229
    %426 = vst [vmem:[#allocation5 + $0x58] sm:$0xff] %v230
    %427 = vst [vmem:[#allocation5 + $0x60] sm:$0xff] %v231
    %428 = vst [vmem:[#allocation5 + $0x68] sm:$0xff] %v232
    %429 = vst [vmem:[#allocation5 + $0x70] sm:$0xff] %v233
    %430 = vst [vmem:[#allocation5 + $0x78] sm:$0xff] %v234
    %431 = vst [vmem:[#allocation5 + $0x80] sm:$0xff] %v235
    %432 = vst [vmem:[#allocation5 + $0x88] sm:$0xff] %v236
    %433 = vst [vmem:[#allocation5 + $0x90] sm:$0xff] %v237
    %434 = vst [vmem:[#allocation5 + $0x98] sm:$0xff] %v238
    %435 = vst [vmem:[#allocation5 + $0xa0] sm:$0xff] %v239
    %436 = vst [vmem:[#allocation5 + $0xa8] sm:$0xff] %v240
    %437 = vst [vmem:[#allocation5 + $0xb0] sm:$0xff] %v241
    %438 = vst [vmem:[#allocation5 + $0xb8] sm:$0xff] %v242
    %439 = vst [vmem:[#allocation5 + $0xc0] sm:$0xff] %v243
    %440 = vst [vmem:[#allocation5 + $0xc8] sm:$0xff] %v244
    %441 = vst [vmem:[#allocation5 + $0xd0] sm:$0xff] %v245
    %442 = vst [vmem:[#allocation5 + $0xd8] sm:$0xff] %v246
    %443 = vst [vmem:[#allocation5 + $0xe0] sm:$0xff] %v247
    %444 = vst [vmem:[#allocation5 + $0xe8] sm:$0xff] %v248
    %445 = vst [vmem:[#allocation5 + $0xf0] sm:$0xff] %v249
    %446 = vst [vmem:[#allocation5 + $0xf8] sm:$0xff] %v250
    %447 = vst [vmem:[#allocation5 + $0x100] sm:$0xff] %v251
    %448 = vst [vmem:[#allocation5 + $0x108] sm:$0xff] %v252
    %449 = vst [vmem:[#allocation5 + $0x110] sm:$0xff] %v253
    %450 = vst [vmem:[#allocation5 + $0x118] sm:$0xff] %v254
    %451 = vst [vmem:[#allocation5 + $0x120] sm:$0xff] %v255
    %452 = vst [vmem:[#allocation5 + $0x128] sm:$0xff] %v256
    %453 = vst [vmem:[#allocation5 + $0x130] sm:$0xff] %v257
    %454 = vst [vmem:[#allocation5 + $0x138] sm:$0xff] %v258
    %455 = vst [vmem:[#allocation5 + $0x140] sm:$0xff] %v259
    %456 = vst [vmem:[#allocation5 + $0x148] sm:$0xff] %v260
    %457 = vst [vmem:[#allocation5 + $0x150] sm:$0xff] %v261
    %458 = vst [vmem:[#allocation5 + $0x158] sm:$0xff] %v262
    %459 = vst [vmem:[#allocation5 + $0x160] sm:$0xff] %v263
    %460 = vst [vmem:[#allocation5 + $0x168] sm:$0xff] %v264
    %461 = vst [vmem:[#allocation5 + $0x170] sm:$0xff] %v265
    %462 = vst [vmem:[#allocation5 + $0x178] sm:$0xff] %v266
    %463 = vst [vmem:[#allocation5 + $0x180] sm:$0xff] %v267
    %464 = vst [vmem:[#allocation5 + $0x188] sm:$0xff] %v268
    %465 = vst [vmem:[#allocation5 + $0x190] sm:$0xff] %v269
    %466 = vst [vmem:[#allocation5 + $0x198] sm:$0xff] %v270
    %467 = vst [vmem:[#allocation5 + $0x1a0] sm:$0xff] %v271
    %468 = vst [vmem:[#allocation5 + $0x1a8] sm:$0xff] %v272
    %469 = vst [vmem:[#allocation5 + $0x1b0] sm:$0xff] %v273
    %470 = vst [vmem:[#allocation5 + $0x1b8] sm:$0xff] %v274
    %471 = vst [vmem:[#allocation5 + $0x1c0] sm:$0xff] %v275
    %472 = vst [vmem:[#allocation5 + $0x1c8] sm:$0xff] %v276
    %473 = vst [vmem:[#allocation5 + $0x1d0] sm:$0xff] %v277
    %474 = vst [vmem:[#allocation5 + $0x1d8] sm:$0xff] %v278
    %475 = vst [vmem:[#allocation5 + $0x1e0] sm:$0xff] %v279
    %476 = vst [vmem:[#allocation5 + $0x1e8] sm:$0xff] %v280
    %477 = vst [vmem:[#allocation5 + $0x1f0] sm:$0xff] %v281
    %478 = vst [vmem:[#allocation5 + $0x1f8] sm:$0xff] %v282
    %479 = vst [vmem:[#allocation5 + $0x200] sm:$0xff] %v283
    %480 = vst [vmem:[#allocation5 + $0x208] sm:$0xff] %v284
    %481 = vst [vmem:[#allocation5 + $0x210] sm:$0xff] %v285
    %482 = vst [vmem:[#allocation5 + $0x218] sm:$0xff] %v286
    %483 = vst [vmem:[#allocation5 + $0x220] sm:$0xff] %v287
    %484 = vst [vmem:[#allocation5 + $0x228] sm:$0xff] %v288
    %485 = vst [vmem:[#allocation5 + $0x230] sm:$0xff] %v289
    %486 = vst [vmem:[#allocation5 + $0x238] sm:$0xff] %v290
    %487 = vst [vmem:[#allocation5 + $0x240] sm:$0xff] %v291
    %488 = vst [vmem:[#allocation5 + $0x248] sm:$0xff] %v292
    %489 = vst [vmem:[#allocation5 + $0x250] sm:$0xff] %v293
    %490 = vst [vmem:[#allocation5 + $0x258] sm:$0xff] %v294
    %491 = vst [vmem:[#allocation5 + $0x260] sm:$0xff] %v295
    %492 = vst [vmem:[#allocation5 + $0x268] sm:$0xff] %v296
    %493 = vst [vmem:[#allocation5 + $0x270] sm:$0xff] %v297
    %494 = vst [vmem:[#allocation5 + $0x278] sm:$0xff] %v298
    %495 = vst [vmem:[#allocation5 + $0x280] sm:$0xff] %v299
    %496 = vst [vmem:[#allocation5 + $0x288] sm:$0xff] %v300
    %497 = vst [vmem:[#allocation5 + $0x290] sm:$0xff] %v301
    %498 = vst [vmem:[#allocation5 + $0x298] sm:$0xff] %v302
    %499 = vst [vmem:[#allocation5 + $0x2a0] sm:$0xff] %v303
    %500 = vst [vmem:[#allocation5 + $0x2a8] sm:$0xff] %v304
    %501 = vst [vmem:[#allocation5 + $0x2b0] sm:$0xff] %v305
    %502 = vst [vmem:[#allocation5 + $0x2b8] sm:$0xff] %v306
    %503 = vst [vmem:[#allocation5 + $0x2c0] sm:$0xff] %v307
    %504 = vst [vmem:[#allocation5 + $0x2c8] sm:$0xff] %v308
    %505 = vst [vmem:[#allocation5 + $0x2d0] sm:$0xff] %v309
    %506 = vst [vmem:[#allocation5 + $0x2d8] sm:$0xff] %v310
    %507 = vst [vmem:[#allocation5 + $0x2e0] sm:$0xff] %v311
    %508 = vst [vmem:[#allocation5 + $0x2e8] sm:$0xff] %v312
    %509 = vst [vmem:[#allocation5 + $0x2f0] sm:$0xff] %v313
    %510 = vst [vmem:[#allocation5 + $0x2f8] sm:$0xff] %v314
    %511 = vst [vmem:[#allocation5 + $0x300] sm:$0xff] %v315
    %512 = vst [vmem:[#allocation5 + $0x308] sm:$0xff] %v316
    %513 = vst [vmem:[#allocation5 + $0x310] sm:$0xff] %v317
    %514 = vst [vmem:[#allocation5 + $0x318] sm:$0xff] %v318
    %515 = vst [vmem:[#allocation5 + $0x320] sm:$0xff] %v319
    %516 = vst [vmem:[#allocation5 + $0x328] sm:$0xff] %v320
    %517 = vst [vmem:[#allocation5 + $0x330] sm:$0xff] %v321
    %518 = vst [vmem:[#allocation5 + $0x338] sm:$0xff] %v322
    %519 = vst [vmem:[#allocation5 + $0x340] sm:$0xff] %v323
    %520 = vst [vmem:[#allocation5 + $0x348] sm:$0xff] %v324
    %521 = vst [vmem:[#allocation5 + $0x350] sm:$0xff] %v325
    %522 = vst [vmem:[#allocation5 + $0x358] sm:$0xff] %v326
    %523 = vst [vmem:[#allocation5 + $0x360] sm:$0xff] %v327
    %524 = vst [vmem:[#allocation5 + $0x368] sm:$0xff] %v328
    %525 = vst [vmem:[#allocation5 + $0x370] sm:$0xff] %v329
    %526 = vst [vmem:[#allocation5 + $0x378] sm:$0xff] %v330
    %527 = vst [vmem:[#allocation5 + $0x380] sm:$0xff] %v331
    %528 = vst [vmem:[#allocation5 + $0x388] sm:$0xff] %v332
    %529 = vst [vmem:[#allocation5 + $0x390] sm:$0xff] %v333
    %530 = vst [vmem:[#allocation5 + $0x398] sm:$0xff] %v334
    %531 = vst [vmem:[#allocation5 + $0x3a0] sm:$0xff] %v335
    %532 = vst [vmem:[#allocation5 + $0x3a8] sm:$0xff] %v336
    %533 = vst [vmem:[#allocation5 + $0x3b0] sm:$0xff] %v337
    %534 = vst [vmem:[#allocation5 + $0x3b8] sm:$0xff] %v338
    %535 = vst [vmem:[#allocation5 + $0x3c0] sm:$0xff] %v339
    %536 = vst [vmem:[#allocation5 + $0x3c8] sm:$0xff] %v340
    %537 = vst [vmem:[#allocation5 + $0x3d0] sm:$0xff] %v341
    %538 = vst [vmem:[#allocation5 + $0x3d8] sm:$0xff] %v342
    %539 = vst [vmem:[#allocation5 + $0x3e0] sm:$0xff] %v343
    %540 = vst [vmem:[#allocation5 + $0x3e8] sm:$0xff] %v344
    %541 = vst [vmem:[#allocation5 + $0x3f0] sm:$0xff] %v345
    %542 = vst [vmem:[#allocation5 + $0x3f8] sm:$0xff] %v346
    %543 = vst [vmem:[#allocation5 + $0x400] sm:$0xff] %v347
    %544 = vst [vmem:[#allocation5 + $0x408] sm:$0xff] %v348
    %545 = vst [vmem:[#allocation5 + $0x410] sm:$0xff] %v349
    %546 = vst [vmem:[#allocation5 + $0x418] sm:$0xff] %v350
    %547 = vst [vmem:[#allocation5 + $0x420] sm:$0xff] %v351
    %548 = vst [vmem:[#allocation5 + $0x428] sm:$0xff] %v352
    %549 = vst [vmem:[#allocation5 + $0x430] sm:$0xff] %v353
    %550 = vst [vmem:[#allocation5 + $0x438] sm:$0xff] %v354
    %551 = vst [vmem:[#allocation5 + $0x440] sm:$0xff] %v355
    %552 = vst [vmem:[#allocation5 + $0x448] sm:$0xff] %v356
    %553 = vst [vmem:[#allocation5 + $0x450] sm:$0xff] %v357
    %554 = vst [vmem:[#allocation5 + $0x458] sm:$0xff] %v358
    %555 = vst [vmem:[#allocation5 + $0x460] sm:$0xff] %v359
    %556 = vst [vmem:[#allocation5 + $0x468] sm:$0xff] %v360
    %557 = vst [vmem:[#allocation5 + $0x470] sm:$0xff] %v361
    %558 = vst [vmem:[#allocation5 + $0x478] sm:$0xff] %v362
    %559 = vst [vmem:[#allocation5 + $0x480] sm:$0xff] %v363
    %560 = vst [vmem:[#allocation5 + $0x488] sm:$0xff] %v364
    %561 = vst [vmem:[#allocation5 + $0x490] sm:$0xff] %v365
    %562 = vst [vmem:[#allocation5 + $0x498] sm:$0xf] %v366
    %563 = vst [vmem:[#allocation5 + $0x4a0] sm:$0xf] %v367
    %564 = vst [vmem:[#allocation5 + $0x4a8] sm:$0xf] %v368
    %565 = vst [vmem:[#allocation5 + $0x4b0] sm:$0xf] %v369
    %566 = vst [vmem:[#allocation5 + $0x4b8] sm:$0xf] %v370
    %567 = vst [vmem:[#allocation5 + $0x4c0] sm:$0xf] %v371
    %568 = vst [vmem:[#allocation5 + $0x4c8] sm:$0xf] %v372
    %569 = vst [vmem:[#allocation5 + $0x4d0] sm:$0xf] %v373
    %570 = vst [vmem:[#allocation5 + $0x4d8] sm:$0xf] %v374
    %571 = vst [vmem:[#allocation5 + $0x4e0] sm:$0xf] %v375
    %572 = vst [vmem:[#allocation5 + $0x4e8] sm:$0xf] %v376
    %573 = vst [vmem:[#allocation5 + $0x4f0] sm:$0xf] %v377
    %574 = vst [vmem:[#allocation5 + $0x4f8] sm:$0xf] %v378
    %575 = vst [vmem:[#allocation5 + $0x500] sm:$0xf] %v379
    %576 = vst [vmem:[#allocation5 + $0x508] sm:$0xf] %v380
    %577 = vst [vmem:[#allocation5 + $0x510] sm:$0xf] %v381
    %578 = vst [vmem:[#allocation5 + $0x518] sm:$0xf] %v382
    %579 = vst [vmem:[#allocation5 + $0x520] sm:$0xf] %v383
    %580 = vst [vmem:[#allocation5 + $0x528] sm:$0xf] %v384
    %581 = vst [vmem:[#allocation5 + $0x530] sm:$0xf] %v385
    %582 = vst [vmem:[#allocation5 + $0x538] sm:$0xf] %v386
    %583 = vst [vmem:[#allocation5 + $0x540] sm:$0xf] %v387
    %584 = vst [vmem:[#allocation5 + $0x548] sm:$0xf] %v388
    %585 = vst [vmem:[#allocation5 + $0x550] sm:$0xf] %v389
    %586 = vst [vmem:[#allocation5 + $0x558] sm:$0xf] %v390
    %587 = vst [vmem:[#allocation5 + $0x560] sm:$0xf] %v391
    %588 = vst [vmem:[#allocation5 + $0x568] sm:$0xf] %v392
    %589 = vst [vmem:[#allocation5 + $0x570] sm:$0xf] %v393
    %590 = vst [vmem:[#allocation5 + $0x578] sm:$0xf] %v394
    %591 = vst [vmem:[#allocation5 + $0x580] sm:$0xf] %v395
    %592 = vst [vmem:[#allocation5 + $0x588] sm:$0xf] %v396
    %593 = vst [vmem:[#allocation5 + $0x590] sm:$0xf] %v397
    %594 = vst [vmem:[#allocation5 + $0x598] sm:$0xf] %v398
    %595 = vst [vmem:[#allocation5 + $0x5a0] sm:$0xf] %v399
    %596 = vst [vmem:[#allocation5 + $0x5a8] sm:$0xf] %v400
    %597 = vst [vmem:[#allocation5 + $0x5b0] sm:$0xf] %v401
    %598 = vst [vmem:[#allocation5 + $0x5b8] sm:$0xf] %v402
    %599 = vst [vmem:[#allocation5 + $0x5c0] sm:$0xf] %v403
    %600 = vst [vmem:[#allocation5 + $0x5c8] sm:$0xf] %v404
    %601 = vst [vmem:[#allocation5 + $0x5d0] sm:$0xf] %v405
    %602 = vst [vmem:[#allocation5 + $0x5d8] sm:$0xf] %v406
    %603 = vst [vmem:[#allocation5 + $0x5e0] sm:$0xf] %v407
    %604 = vst [vmem:[#allocation5 + $0x5e8] sm:$0xf] %v408
    %605 = vst [vmem:[#allocation5 + $0x5f0] sm:$0xf] %v409
    %606 = vst [vmem:[#allocation5 + $0x5f8] sm:$0xf] %v410
    %607 = vst [vmem:[#allocation5 + $0x600] sm:$0xf] %v411
    %608 = vst [vmem:[#allocation5 + $0x608] sm:$0xf] %v412
    %609 = vst [vmem:[#allocation5 + $0x610] sm:$0xf] %v413
    %610 = vst [vmem:[#allocation5 + $0x618] sm:$0xf] %v414
    // Predicated region
    $region10: #{tpu_custom_call.1} parent=1 // pred_check
      _
    $region11: #{tpu_custom_call.1} parent=1 // pred_check_branch
      %612 = sbr.rel (0) target = $region13
    $region12: #{tpu_custom_call.1} parent=1 // pred_region
      %s614 = ssub.s32 25088, 25088
      %615 = vsyncadd [#allocation4], %s614
      %s616 = sshll.u32 [#allocation5], 4
      %s617 = int_to_ptr.vmem [resolvable:$true] %s616
      %622 = dma.vmem_to_hbm [thread:$0]  %s617, 25088, %s1, [#allocation4], 6272, 6272, 392
    $region13: #{tpu_custom_call.1} parent=1 // pred_fallthru
      _
    // Predicated region
    $region14: #{tpu_custom_call.1} parent=1 // pred_check
      _
    $region15: #{tpu_custom_call.1} parent=1 // pred_check_branch
      %624 = sbr.rel (0) target = $region17
    $region16: #{tpu_custom_call.1} parent=1 // pred_region
      %625 = dma.done [#allocation4], 25088
    $region17: #{tpu_custom_call.1} parent=1 // pred_fallthru
      _
    %626 = vsyncpa [#allocation3], 1
    %627 = vsyncpa [#allocation4], 1

</llo_original>
